<compile_context>
chip_gen: v5e
topology: v5e:2x2
jax: 0.10.0
libtpu: 0.0.40
codegen_flags: <defaults>
</compile_context>

<pallas_src>
import jax
import jax.numpy as jnp
from jax import lax
from jax.experimental import pallas as pl
from jax.experimental.pallas import tpu as pltpu
from typing import NamedTuple, Optional


class Data(NamedTuple):
    x: jnp.ndarray
    edge_index: jnp.ndarray
    batch: Optional[jnp.ndarray]


def _round_up(v: int, m: int) -> int:
    return (v + m - 1) // m * m


def _unpool_row_gather_kernel(offs_ref, rows_ref, srcs_ref, x_hbm, out_ref, copy_sem):
    """Gather pooled rows into one output row-tile.

    offs_ref : SMEM int32 [num_tiles+1]  CSR offsets into rows_ref / srcs_ref
    rows_ref : SMEM int32 [K]            local (in-tile) destination row
    srcs_ref : SMEM int32 [K]            source row in x
    x_hbm    : ANY (HBM)  [K, Fp]        pooled features (never copied to VMEM wholesale)
    out_ref  : VMEM       [Tn, Fp]       output tile (pipelined, double-buffered)
    copy_sem : scalar DMA semaphore shared by all row copies of this step
    """
    i = pl.program_id(0)

    # Rows that receive no pooled node must be zero.  Write the whole tile with
    # one lane-dense store; the row DMAs issued below (program-order later on
    # the same buffer) overwrite the rows that do receive data and are drained
    # before the body returns, i.e. before the pipeline writes the tile back.
    out_ref[...] = jnp.zeros_like(out_ref)

    start = offs_ref[i]
    stop = offs_ref[i + 1]

    def _issue(j, carry):
        pltpu.make_async_copy(
            x_hbm.at[srcs_ref[j]], out_ref.at[rows_ref[j]], copy_sem
        ).start()
        return carry

    lax.fori_loop(start, stop, _issue, 0)

    def _drain(j, carry):
        # Same-shaped descriptor => same completion amount on the shared sem.
        pltpu.make_async_copy(
            x_hbm.at[srcs_ref[j]], out_ref.at[rows_ref[j]], copy_sem
        ).wait()
        return carry

    lax.fori_loop(start, stop, _drain, 0)


def unpool_scatter(x, global_idx, num_out_rows, *, tile_rows=None):
    """Scatter rows of x into a zeros[num_out_rows, F] buffer (Pallas row gather)."""
    k, f = x.shape
    n = int(num_out_rows)
    if k == 0 or n == 0:
        return jnp.zeros((n, f), dtype=x.dtype)

    itemsize = jnp.dtype(x.dtype).itemsize

    # Lane-dense output stores; skip feature padding entirely when possible.
    fp = f if f % 128 == 0 else _round_up(f, 128)

    # Tile rows: as large as the VMEM budget allows (double-buffered output
    # block <= ~8 MiB) — same derivation works for v5e / v6e / v7x.
    if tile_rows is None:
        budget = 8 * 1024 * 1024
        tn = min(2048, budget // (2 * fp * itemsize), _round_up(n, 8))
    else:
        tn = min(tile_rows, _round_up(n, 8))
    tn = max(8, (tn // 8) * 8)

    n_pad = _round_up(n, tn)
    num_tiles = n_pad // tn

    global_idx = global_idx.astype(jnp.int32)

    # Winner-per-destination inverse map (PyTorch scatter with duplicate
    # indices has an unspecified winner; XLA's scatter picks one here too).
    # Out-of-range destinations are dropped.
    inv = jnp.full((n_pad,), k, dtype=jnp.int32)
    inv = inv.at[global_idx].set(jnp.arange(k, dtype=jnp.int32), mode="drop")

    # Compact the (destination, source) pairs (at most k of them) in ascending
    # destination order, then build per-tile CSR offsets.
    valid = inv < k
    pos = jnp.cumsum(valid.astype(jnp.int32)) - 1
    scatter_idx = jnp.where(valid, pos, k)                    # k == OOB -> dropped
    ar_n = jnp.arange(n_pad, dtype=jnp.int32)
    dest = jnp.full((k,), n_pad, dtype=jnp.int32).at[scatter_idx].set(ar_n, mode="drop")
    srcs = jnp.zeros((k,), dtype=jnp.int32).at[scatter_idx].set(inv, mode="drop")

    rows_local = (dest % tn).astype(jnp.int32)
    tile_of = (dest // tn).astype(jnp.int32)                  # padding entries -> num_tiles
    offsets = jnp.searchsorted(
        tile_of, jnp.arange(num_tiles + 1, dtype=jnp.int32), side="left"
    ).astype(jnp.int32)

    # Pad feature dim of x only if needed (x itself stays in HBM).
    if fp != f:
        x_p = jnp.zeros((k, fp), dtype=x.dtype).at[:, :f].set(x)
    else:
        x_p = x

    out = pl.pallas_call(
        _unpool_row_gather_kernel,
        out_shape=jax.ShapeDtypeStruct((n_pad, fp), x.dtype),
        grid_spec=pltpu.PrefetchScalarGridSpec(
            num_scalar_prefetch=3,                            # offsets, rows, srcs -> SMEM
            grid=(num_tiles,),
            in_specs=[pl.BlockSpec(memory_space=pl.ANY)],     # x stays in HBM, no auto-DMA
            out_specs=pl.BlockSpec((tn, fp), lambda i, offs, rows, srcs: (i, 0)),
            scratch_shapes=[pltpu.SemaphoreType.DMA(())],
        ),
        compiler_params=pltpu.CompilerParams(
            # Independent output tiles.
            # TODO(synk): verify on v7x that this actually shards across both
            # TensorCores; if not, switch this axis to pltpu.CORE_PARALLEL.
            dimension_semantics=("parallel",),
            vmem_limit_bytes=32 * 1024 * 1024,
        ),
    )(offsets, rows_local, srcs, x_p)

    # Unpad only when padding was actually introduced.
    if n_pad != n or fp != f:
        out = out[:n, :f]
    return out


def unpool_forward(data: Data, idx, orig_num_nodes):
    """Forward pass matching Unpool.forward semantics (fully jittable)."""
    x, edge_index, batch = data.x, data.edge_index, data.batch
    if batch is None:
        batch = jnp.zeros((x.shape[0],), dtype=jnp.int32)

    # `max_nodes` in the reference is computed but never used (dead code).

    orig = jnp.asarray(orig_num_nodes, dtype=jnp.int32)
    if orig.ndim == 0:
        orig = orig.reshape(1)
    num_graphs = orig.shape[0]              # static: one entry per graph (no host sync)

    batch_offsets = jnp.zeros((num_graphs,), dtype=jnp.int32)
    if num_graphs > 1:                      # mirrors `if batch.max() > 0:`
        batch_offsets = batch_offsets.at[1:].set(jnp.cumsum(orig)[:-1])

    idx = jnp.asarray(idx, dtype=jnp.int32)
    global_idx = idx + batch_offsets[batch[idx]]

    new_x = unpool_scatter(x, global_idx, batch.shape[0])
    return Data(x=new_x, edge_index=edge_index, batch=batch)


if __name__ == "__main__":
    key = jax.random.PRNGKey(0)
    k1, k2, k3 = jax.random.split(key, 3)

    # ---- Test 1: full Unpool.forward on a 2-graph batch ---------------------
    num_graphs = 2
    nodes_per_graph = 16
    total_nodes = num_graphs * nodes_per_graph          # 32 output rows
    feat = 128                                          # lane-aligned -> no unpad copy
    kept = 8                                            # pooled nodes kept

    x_pooled = jax.random.normal(k1, (kept, feat), dtype=jnp.float32)
    edge_index = jax.random.randint(k2, (2, 20), 0, total_nodes, dtype=jnp.int32)
    batch = jnp.repeat(jnp.arange(num_graphs, dtype=jnp.int32), nodes_per_graph)
    orig_num_nodes = jnp.full((num_graphs,), nodes_per_graph, dtype=jnp.int32)
    idx = jnp.array([0, 2, 4, 6, 1, 3, 5, 7], dtype=jnp.int32)

    data = Data(x=x_pooled, edge_index=edge_index, batch=batch)
    out = jax.jit(unpool_forward)(data, idx, orig_num_nodes)
    jax.block_until_ready(out.x)

    batch_offsets_ref = jnp.zeros((num_graphs,), jnp.int32).at[1:].set(
        jnp.cumsum(orig_num_nodes)[:-1])
    global_idx_ref = idx + batch_offsets_ref[batch[idx]]
    ref = jnp.zeros((total_nodes, feat), jnp.float32).at[global_idx_ref].set(x_pooled)
    assert out.x.shape == (total_nodes, feat)
    assert jnp.array_equal(out.x, ref), "Pallas unpool mismatch vs reference (test 1)"

    # ---- Test 2: multi-tile grid + feature / row padding path ---------------
    n2, f2, kept2 = 40, 32, 6
    x2 = jax.random.normal(k3, (kept2, f2), dtype=jnp.float32)
    gi2 = jnp.array([5, 0, 17, 33, 12, 38], dtype=jnp.int32)
    out2 = jax.jit(lambda xv, gv: unpool_scatter(xv, gv, n2, tile_rows=16))(x2, gi2)
    jax.block_until_ready(out2)
    ref2 = jnp.zeros((n2, f2), jnp.float32).at[gi2].set(x2)
    assert out2.shape == (n2, f2)
    assert jnp.array_equal(out2, ref2), "Pallas unpool mismatch vs reference (test 2)"

    print("KERNEL_OK")
</pallas_src>

<mosaic_0001>
module attributes {stable_mosaic.version = 11 : i64} {
  func.func @_unpool_row_gather_kernel(%arg0: i32, %arg1: memref<2xi32, #tpu.memory_space<smem>>, %arg2: memref<8xi32, #tpu.memory_space<smem>>, %arg3: memref<8xi32, #tpu.memory_space<smem>>, %arg4: memref<8x128xf32, #tpu.memory_space<any>>, %arg5: memref<32x128xf32, #tpu.memory_space<vmem>>, %arg6: memref<!tpu.dma_semaphore, #tpu.memory_space<semaphore_mem>>) attributes {dimension_semantics = [#tpu.dimension_semantics<parallel>], iteration_bounds = array<i64: 1>, scalar_prefetch = 3 : i64, scratch_operands = 1 : i64, tpu.core_type = #tpu.core_type<tc>, window_params = [{}, {transform_indices = @transform_1, window_bounds = array<i64: 32, 128>}]} {
    %cst = arith.constant 0.000000e+00 : f32
    %0 = vector.broadcast %cst : f32 to vector<32x128xf32>
    %c0 = arith.constant 0 : index
    %c0_0 = arith.constant 0 : index
    %1 = vector.load %arg5[%c0, %c0_0] : memref<32x128xf32, #tpu.memory_space<vmem>>, vector<32x128xf32>
    tpu.vector_store %arg5[%c0, %c0_0], %0 {strides = array<i32>} : memref<32x128xf32, #tpu.memory_space<vmem>>, vector<32x128xf32>,
    %2 = arith.index_cast %arg0 : i32 to index
    %3 = memref.load %arg1[%2] : memref<2xi32, #tpu.memory_space<smem>>
    %c1_i32 = arith.constant 1 : i32
    %4 = arith.addi %arg0, %c1_i32 : i32
    %5 = arith.index_cast %4 : i32 to index
    %6 = memref.load %arg1[%5] : memref<2xi32, #tpu.memory_space<smem>>
    %c0_i32 = arith.constant 0 : i32
    %7 = arith.subi %6, %3 : i32
    %8 = arith.addi %3, %7 : i32
    %c1_i32_1 = arith.constant 1 : i32
    scf.for %arg7 = %3 to %8 step %c1_i32_1  : i32 {
      %11 = arith.index_cast %arg7 : i32 to index
      %12 = memref.load %arg3[%11] : memref<8xi32, #tpu.memory_space<smem>>
      %13 = arith.index_cast %arg7 : i32 to index
      %14 = memref.load %arg2[%13] : memref<8xi32, #tpu.memory_space<smem>>
      %c0_i32_4 = arith.constant 0 : i32
      %15 = tpu.memref_slice %arg4[%12, %c0_i32_4] : memref<8x128xf32, #tpu.memory_space<any>> -> memref<1x128xf32, #tpu.memory_space<any>>
      %16 = tpu.memref_squeeze %15 : memref<1x128xf32, #tpu.memory_space<any>> -> memref<128xf32, #tpu.memory_space<any>>
      %c0_i32_5 = arith.constant 0 : i32
      %17 = tpu.memref_slice %arg5[%14, %c0_i32_5] : memref<32x128xf32, #tpu.memory_space<vmem>> -> memref<1x128xf32, #tpu.memory_space<vmem>>
      %18 = tpu.memref_squeeze %17 : memref<1x128xf32, #tpu.memory_space<vmem>> -> memref<128xf32, #tpu.memory_space<vmem>>
      tpu.enqueue_dma source(%16 : memref<128xf32, #tpu.memory_space<any>>) target(%18 : memref<128xf32, #tpu.memory_space<vmem>>) target_semaphore(%arg6 : memref<!tpu.dma_semaphore, #tpu.memory_space<semaphore_mem>>)
    }
    %c0_i32_2 = arith.constant 0 : i32
    %9 = arith.subi %6, %3 : i32
    %10 = arith.addi %3, %9 : i32
    %c1_i32_3 = arith.constant 1 : i32
    scf.for %arg7 = %3 to %10 step %c1_i32_3  : i32 {
      %11 = arith.index_cast %arg7 : i32 to index
      %12 = memref.load %arg3[%11] : memref<8xi32, #tpu.memory_space<smem>>
      %13 = arith.index_cast %arg7 : i32 to index
      %14 = memref.load %arg2[%13] : memref<8xi32, #tpu.memory_space<smem>>
      %c0_i32_4 = arith.constant 0 : i32
      %15 = tpu.memref_slice %arg4[%12, %c0_i32_4] : memref<8x128xf32, #tpu.memory_space<any>> -> memref<1x128xf32, #tpu.memory_space<any>>
      %16 = tpu.memref_squeeze %15 : memref<1x128xf32, #tpu.memory_space<any>> -> memref<128xf32, #tpu.memory_space<any>>
      %c0_i32_5 = arith.constant 0 : i32
      %17 = tpu.memref_slice %arg5[%14, %c0_i32_5] : memref<32x128xf32, #tpu.memory_space<vmem>> -> memref<1x128xf32, #tpu.memory_space<vmem>>
      %18 = tpu.memref_squeeze %17 : memref<1x128xf32, #tpu.memory_space<vmem>> -> memref<128xf32, #tpu.memory_space<vmem>>
      tpu.wait_dma2 semaphore(%arg6 : memref<!tpu.dma_semaphore, #tpu.memory_space<semaphore_mem>>) src(%16 : memref<128xf32, #tpu.memory_space<any>>) dst(%18 : memref<128xf32, #tpu.memory_space<vmem>>)
    }
    return
  }
  func.func @transform_1(%arg0: i32, %arg1: memref<2xi32, #tpu.memory_space<smem>>, %arg2: memref<8xi32, #tpu.memory_space<smem>>, %arg3: memref<8xi32, #tpu.memory_space<smem>>) -> (i32, i32) {
    %c0_i32 = arith.constant 0 : i32
    %c0_i32_0 = arith.constant 0 : i32
    return %arg0, %c0_i32 : i32, i32
  }
}

</mosaic_0001>

<llo_original>
// kernel: custom-call
$region0: #{custom-call}
  %s0 = inlined_call_operand.vmem [shape: u32[2], index: 0, kind: output, shape index: {}]

// kernel: unpool_forward.1
$region0: #{unpool_forward.1}
  #allocation0 [shape = 'u32[]', space=smem, size = 0x4, offset = 0x4, fixed_abs, tag = 'smem constant byte address 0x4 - core index']
  #allocation1 [shape = 'u32[72,128]{1,0:T(1,128)}', space=vmem, size = 0x9000, scoped, tag = 'internal scratch']
  #allocation2 [shape = 's32[1]{0}', space=sflag, size = 0x4, scoped, tag = 'scratch operand']
  #allocation3 [shape = 's32[1]{0}', space=sflag, size = 0x4, scoped, tag = 'scoped memory for unpool_forward.1']
  #allocation4 [shape = 'u8[512]{0}', space=smem, size = 0x200, scoped, tag = 'prefetched SMEM operand 0']
  #allocation5 [shape = 'u8[512]{0}', space=smem, size = 0x200, scoped, tag = 'prefetched SMEM operand 1']
  #allocation6 [shape = 'u8[512]{0}', space=smem, size = 0x200, scoped, tag = 'prefetched SMEM operand 2']
  #allocation9 [shape = 's32[]', space=sflag, size = 0x4, offset = 0, fixed_abs, tag = 'sflag constant byte address 0x0 - dummy sync flag']
  %s0 = inlined_call_operand.vmem [shape: s32[2], index: 0, kind: input, shape index: {}]
  %s1 = inlined_call_operand.vmem [shape: s32[8], index: 1, kind: input, shape index: {}]
  %s2 = inlined_call_operand.vmem [shape: s32[8], index: 2, kind: input, shape index: {}]
  %s3 = inlined_call_operand.vmem [shape: f32[8,128], index: 3, kind: input, shape index: {}]
  %s4 = inlined_call_operand.hbm [shape: f32[32,128], index: 4, kind: output, shape index: {}]
  %s5 = sld [smem:[#allocation0]]
  $region54: #{unpool_forward.1} parent=0
    _
  %s7 = ssub.s32 1, %s5
  %s8 = scalar_select 0, %s7, %s5
  %s10 = sshll.u32 %s0, 4
  %s11 = int_to_ptr.vmem [resolvable:$true] %s10
  %13 = dma.vmem_to_smem %s11, 16, [#allocation4], [#allocation3]
  %s15 = sshll.u32 %s1, 4
  %s16 = int_to_ptr.vmem [resolvable:$true] %s15
  %18 = dma.vmem_to_smem %s16, 16, [#allocation5], [#allocation3]
  %s20 = sshll.u32 %s2, 4
  %s21 = int_to_ptr.vmem [resolvable:$true] %s20
  %23 = dma.vmem_to_smem %s21, 16, [#allocation6], [#allocation3]
  %25 = dma.done [#allocation3], 48
  %26 = sfence
  $region1: #{unpool_forward.1} parent=0
    #allocation7 [shape = 'u8[16384]{0}', space=vmem, size = 0x4000, scoped, tag = 'output window, operand 0, single buffered']
    #allocation8 [shape = 's32[1]{0}', space=sflag, size = 0x4, scoped, tag = 'scoped memory for unpool_forward.1']
    %27 = vsyncpa [#allocation8], 0
    %28 = vst [vmem:[#allocation7] sm:$0xff] 0.0
    %29 = vst [vmem:[#allocation7 + $0x8] sm:$0xff] 0.0
    %30 = vst [vmem:[#allocation7 + $0x10] sm:$0xff] 0.0
    %31 = vst [vmem:[#allocation7 + $0x18] sm:$0xff] 0.0
    %s32 = sld [smem:[#allocation4]]
    %s33 = sadd.s32 0, 1
    %s34 = sld [smem:[#allocation4 + %s33]]
    // While loop
    $region2: #{unpool_forward.1} parent=1 // loop_pre_header
      _
    $region3: #{unpool_forward.1} parent=1 // loop_header
      %s36 = sphi %s32, %s38
      %p37 = scmp.ge.s32.totalorder %s36, %s34
    $region4: #{unpool_forward.1} parent=1 // loop_header_branch
      %40 = sbr.rel (%p37) target = $region8
    $region5: #{unpool_forward.1} parent=1 // loop_body
      %s41 = sld [smem:[#allocation6 + %s36]]
      %s42 = sld [smem:[#allocation5 + %s36]]
      %s43 = scalar_lea.vmem %s3, %s41
      %s44 = scalar_lea.vmem [#allocation7], %s42
      // Predicated region
      $region9: #{unpool_forward.1} parent=5 // pred_check
        _
      $region10: #{unpool_forward.1} parent=5 // pred_check_branch
        %46 = sbr.rel target = $region12
      $region11: #{unpool_forward.1} parent=5 // pred_region
        // Predicated region
        $region24: #{unpool_forward.1} parent=11 // pred_check
          _
        $region25: #{unpool_forward.1} parent=11 // pred_check_branch
          %62 = sbr.rel (0) target = $region27
        $region26: #{unpool_forward.1} parent=11 // pred_region
          %s64 = ssub.s32 2, 1
          loop: start=0, step=1, limit=1
          $region28: #{unpool_forward.1} parent=26 // loop_pre_header
            _
          $region29: #{unpool_forward.1} parent=26 // loop_header
            %s66 = sphi 0, %s70
            %p67 = scmp.ge.s32.totalorder %s66, 1
            %s71 = sphi %s43, %s43
            %s72 = sphi %s44, %s44
          $region30: #{unpool_forward.1} parent=26 // loop_header_branch
            %69 = sbr.rel (%p67) target = $region34
          $region31: #{unpool_forward.1} parent=26 // loop_body
            %v73 = vld [vmem:[%s71] sm:%s64]
            %74 = vst [vmem:[%s72] sm:%s64] %v73
          $region32: #{unpool_forward.1} parent=26 // loop_footer
            %s70 = sadd.s32 1, %s66
          $region33: #{unpool_forward.1} parent=26 // loop_footer_branch
            %65 = sbr.rel target = $region29
          $region34: #{unpool_forward.1} parent=26 // loop_exit
            _
        $region27: #{unpool_forward.1} parent=11 // pred_fallthru
          _
      $region12: #{unpool_forward.1} parent=5 // pred_fallthru
        _
      // Predicated region
      $region13: #{unpool_forward.1} parent=5 // pred_check
        _
      $region14: #{unpool_forward.1} parent=5 // pred_check_branch
        %48 = sbr.rel (0) target = $region16
      $region15: #{unpool_forward.1} parent=5 // pred_region
        %s50 = ssub.s32 2, 1
        loop: start=0, step=1, limit=1
        $region17: #{unpool_forward.1} parent=15 // loop_pre_header
          _
        $region18: #{unpool_forward.1} parent=15 // loop_header
          %s52 = sphi 0, %s56
          %p53 = scmp.ge.s32.totalorder %s52, 1
          %s57 = sphi %s43, %s43
          %s58 = sphi %s44, %s44
        $region19: #{unpool_forward.1} parent=15 // loop_header_branch
          %55 = sbr.rel (%p53) target = $region23
        $region20: #{unpool_forward.1} parent=15 // loop_body
          %v59 = vld [vmem:[%s57] sm:%s50]
          %60 = vst [vmem:[%s58] sm:%s50] %v59
        $region21: #{unpool_forward.1} parent=15 // loop_footer
          %s56 = sadd.s32 1, %s52
        $region22: #{unpool_forward.1} parent=15 // loop_footer_branch
          %51 = sbr.rel target = $region18
        $region23: #{unpool_forward.1} parent=15 // loop_exit
          _
      $region16: #{unpool_forward.1} parent=5 // pred_fallthru
        _
      // Predicated region
      $region35: #{unpool_forward.1} parent=5 // pred_check
        _
      $region36: #{unpool_forward.1} parent=5 // pred_check_branch
        %77 = sbr.rel (0) target = $region38
      $region37: #{unpool_forward.1} parent=5 // pred_region
        %78 = vsyncadd [#allocation2], 16
      $region38: #{unpool_forward.1} parent=5 // pred_fallthru
        _
    $region6: #{unpool_forward.1} parent=1 // loop_footer
      %s38 = sadd.s32 %s36, 1
    $region7: #{unpool_forward.1} parent=1 // loop_footer_branch
      %35 = sbr.rel target = $region3
    $region8: #{unpool_forward.1} parent=1 // loop_exit
      _
    // While loop
    $region39: #{unpool_forward.1} parent=1 // loop_pre_header
      _
    $region40: #{unpool_forward.1} parent=1 // loop_header
      %s80 = sphi %s32, %s82
      %p81 = scmp.ge.s32.totalorder %s80, %s34
    $region41: #{unpool_forward.1} parent=1 // loop_header_branch
      %84 = sbr.rel (%p81) target = $region45
    $region42: #{unpool_forward.1} parent=1 // loop_body
      %s85 = sld [smem:[#allocation6 + %s80]]
      %s86 = sld [smem:[#allocation5 + %s80]]
      %88 = dma.done [#allocation2], 16
    $region43: #{unpool_forward.1} parent=1 // loop_footer
      %s82 = sadd.s32 %s80, 1
    $region44: #{unpool_forward.1} parent=1 // loop_footer_branch
      %79 = sbr.rel target = $region40
    $region45: #{unpool_forward.1} parent=1 // loop_exit
      _
    // Predicated region
    $region46: #{unpool_forward.1} parent=1 // pred_check
      _
    $region47: #{unpool_forward.1} parent=1 // pred_check_branch
      %90 = sbr.rel (0) target = $region49
    $region48: #{unpool_forward.1} parent=1 // pred_region
      %92 = vsyncadd [#allocation8], 0
      %s93 = sshll.u32 [#allocation7], 4
      %s94 = int_to_ptr.vmem [resolvable:$true] %s93
      %s95 = sshll.u32 %s4, 4
      %s96 = int_to_ptr.hbm [resolvable:$true] %s95
      %101 = dma.vmem_to_hbm [thread:$0]  %s94, 512, %s96, [#allocation8], 128, 128, 8
    $region49: #{unpool_forward.1} parent=1 // pred_fallthru
      _
    // Predicated region
    $region50: #{unpool_forward.1} parent=1 // pred_check
      _
    $region51: #{unpool_forward.1} parent=1 // pred_check_branch
      %103 = sbr.rel (0) target = $region53
    $region52: #{unpool_forward.1} parent=1 // pred_region
      %105 = dma.done [#allocation8], 512
    $region53: #{unpool_forward.1} parent=1 // pred_fallthru
      _
    %106 = vsyncpa [#allocation8], 1
  %107 = vsyncmov [#allocation2]
  %s108 = vpop.sfrf %107
  %p109 = scmp.eq.s32.totalorder %s108, 0
  %p110 = pneg %p109
  %112 = shalt.err (%p110)

</llo_original>
